<compile_context>
chip_gen: v6e
topology: v6e:2x2x1
jax: 0.10.0
libtpu: 0.0.40
codegen_flags: <defaults>
</compile_context>

<pallas_src>
import functools
import math

import jax
import jax.numpy as jnp
from jax.experimental import pallas as pl
from jax.experimental.pallas import tpu as pltpu


_MIN_PALLAS_BYTES = 1 << 20          # below 1 MiB, XLA's fused broadcast add wins
_MAX_TILE_BYTES = 8 * 1024 * 1024    # upper bound on per-buffer tile size


@functools.lru_cache(maxsize=None)
def _vmem_limit_bytes():
    """Generation-aware scoped-VMEM budget (~70% of physical, capped)."""
    cap = 64 * 1024 * 1024           # conservative default (v7x physical VMEM)
    try:
        info = pltpu.get_tpu_info()
        cap = int(getattr(info, "vmem_capacity_bytes", cap)) or cap
    except Exception:
        pass
    return max(32 * 1024 * 1024, min(int(cap * 0.7), 100 * 1024 * 1024))


def _target_tile_bytes():
    # in + out are each double-buffered (= 4 large buffers) plus a tiny bias slab,
    # so keep one tile at <= budget/5.
    return min(_MAX_TILE_BYTES, _vmem_limit_bytes() // 5)


def _round_up(x, m):
    return ((x + m - 1) // m) * m


def _pick_tiles(M, L, itemsize, *, min_steps=4):
    """Pick (tm, tl) row/lane tiles for a streaming (M, L) elementwise op."""
    target = _target_tile_bytes()
    sub = max(8, 32 // itemsize)          # sublane multiple: 8 f32 / 16 bf16 / 32 i8
    row_bytes = max(1, L * itemsize)

    if sub * row_bytes <= target:
        # A sublane-group of full rows fits the target: keep lanes whole, tile rows.
        tl = L
        rows = (target // row_bytes) // sub * sub
        tm = M if rows >= M else max(sub, rows)
    else:
        # Rows are huge: keep a minimal sublane count and tile the lane dimension
        # in multiples of 128 (edge blocks are masked automatically).
        tm = M if M < sub else sub
        tl = (target // (max(1, tm) * itemsize)) // 128 * 128
        tl = max(128, min(tl, _round_up(L, 128)))

    # Best effort: >= min_steps grid steps so the DMA pipeline overlaps and the
    # "parallel" axes can shard across v7x's two TensorCores.  Only shrink rows,
    # never below the (dtype-aware) sublane multiple.
    def steps(tm_, tl_):
        return pl.cdiv(M, tm_) * pl.cdiv(L, tl_)

    while steps(tm, tl) < min_steps and tm > sub:
        nxt = max(sub, (tm // 2) // sub * sub)
        if nxt >= tm:
            break
        tm = nxt
    return tm, tl


def _row_bias_kernel(x_ref, b_ref, o_ref):
    # x: (tm, tl), b: (1, tl) -> bias broadcast along rows (sublanes).
    o_ref[...] = x_ref[...] + b_ref[...]


def _run_row_bias(x2, brow, *, donate=False):
    """x2: (M, L), brow: (1, L). Returns x2 + brow (broadcast over rows)."""
    M, L = x2.shape
    tm, tl = _pick_tiles(M, L, x2.dtype.itemsize)
    grid = (pl.cdiv(M, tm), pl.cdiv(L, tl))

    kwargs = {}
    if donate:
        # Only beneficial when the caller actually donates x's buffer.
        kwargs["input_output_aliases"] = {0: 0}

    return pl.pallas_call(
        _row_bias_kernel,
        out_shape=jax.ShapeDtypeStruct((M, L), x2.dtype),
        grid_spec=pltpu.PrefetchScalarGridSpec(
            num_scalar_prefetch=0,
            grid=grid,
            in_specs=[
                pl.BlockSpec((tm, tl), lambda i, j: (i, j)),
                pl.BlockSpec((1, tl), lambda i, j: (0, j)),   # tiny bias slab
            ],
            out_specs=pl.BlockSpec((tm, tl), lambda i, j: (i, j)),
        ),
        compiler_params=pltpu.CompilerParams(
            dimension_semantics=("parallel", "parallel"),
            vmem_limit_bytes=_vmem_limit_bytes(),
        ),
        **kwargs,
    )(x2, brow)


def add_bias(x, bias_param, *, min_pallas_bytes=_MIN_PALLAS_BYTES, donate=False):
    """Pallas equivalent of AddBias.forward.

    bias_param: shape (C, 1), mirroring torch's Parameter(bias.unsqueeze(1)).
    x: (N, C) or (N, C, H, W) (NCHW, like PyTorch).
    """
    C = bias_param.shape[0]
    b = bias_param.reshape(C).astype(x.dtype)   # matches torch when dtypes agree
    nbytes = x.size * x.dtype.itemsize

    if x.ndim == 2:
        N, Cx = x.shape
        assert Cx == C
        if nbytes < min_pallas_bytes:
            return x + b.reshape(1, C)
        # Lane-dense packing for small C: fold g batch rows into one lane row so the
        # kernel's last dimension is a multiple of 128 (full vst, no masked stores).
        g = 128 // math.gcd(C, 128)
        if C % 128 != 0 and g > 1 and N % g == 0:
            x2 = x.reshape(N // g, g * C)
            brow = jnp.tile(b, g).reshape(1, g * C)
            y2 = _run_row_bias(x2, brow, donate=donate)
            return y2.reshape(N, C)
        # Fallback: direct (N, C) layout (lane-sparse if C < 128, still correct).
        return _run_row_bias(x, b.reshape(1, C), donate=donate)

    elif x.ndim == 4:
        N, Cx, H, W = x.shape
        assert Cx == C
        if nbytes < min_pallas_bytes:
            return x + b.reshape(1, C, 1, 1)
        # Contiguous lane-dense view: (N, C*H*W) + repeated bias row (1, C*H*W).
        # Works for any H*W (lane tiles are multiples of 128; edges are masked).
        L = C * H * W
        x2 = x.reshape(N, L)
        brow = jnp.repeat(b, H * W).reshape(1, L)
        y2 = _run_row_bias(x2, brow, donate=donate)
        return y2.reshape(N, C, H, W)

    else:
        raise ValueError("AddBias expects a 2D or 4D input")


if __name__ == "__main__":
    key = jax.random.PRNGKey(0)
    k_bias, k_x4, k_x2, k_xp, k_x7, k_bb, k_xb = jax.random.split(key, 7)

    C = 4
    # torch: nn.Parameter(bias.unsqueeze(1)) -> (C, 1)
    bias_param = jax.random.normal(k_bias, (C, 1), dtype=jnp.float32)

    # 4D NCHW at the spec's small shape; force the Pallas path so the kernel runs.
    x4 = jax.random.normal(k_x4, (2, C, 16, 16), dtype=jnp.float32)
    y4 = jax.block_until_ready(add_bias(x4, bias_param, min_pallas_bytes=0))
    ref4 = x4 + bias_param.reshape(1, C, 1, 1)
    assert y4.shape == x4.shape and y4.dtype == x4.dtype
    assert jnp.allclose(y4, ref4, atol=1e-6), "4D mismatch"

    # 2D (N, C), N not divisible by the packing factor -> direct layout path.
    x2 = jax.random.normal(k_x2, (8, C), dtype=jnp.float32)
    y2 = jax.block_until_ready(add_bias(x2, bias_param, min_pallas_bytes=0))
    ref2 = x2 + bias_param.reshape(1, C)
    assert y2.shape == x2.shape and y2.dtype == x2.dtype
    assert jnp.allclose(y2, ref2, atol=1e-6), "2D mismatch"

    # 2D (N, C) with N divisible by g -> lane-dense packed path.
    xp = jax.random.normal(k_xp, (64, C), dtype=jnp.float32)
    yp = jax.block_until_ready(add_bias(xp, bias_param, min_pallas_bytes=0))
    refp = xp + bias_param.reshape(1, C)
    assert jnp.allclose(yp, refp, atol=1e-6), "2D packed mismatch"

    # 4D with H*W not a multiple of 128 (7x7 feature map) -> repeated-bias row path.
    C7 = 16
    bias7 = jax.random.normal(k_bb, (C7, 1), dtype=jnp.float32)
    x7 = jax.random.normal(k_x7, (8, C7, 7, 7), dtype=jnp.float32)
    y7 = jax.block_until_ready(add_bias(x7, bias7, min_pallas_bytes=0))
    ref7 = x7 + bias7.reshape(1, C7, 1, 1)
    assert jnp.allclose(y7, ref7, atol=1e-6), "7x7 4D mismatch"

    # Larger 4D case: naturally takes the Pallas path and exercises a multi-step grid.
    Cb = 32
    bias_big = jax.random.normal(k_bb, (Cb, 1), dtype=jnp.float32)
    xb = jax.random.normal(k_xb, (32, Cb, 32, 32), dtype=jnp.float32)
    yb = jax.block_until_ready(add_bias(xb, bias_big))
    refb = xb + bias_big.reshape(1, Cb, 1, 1)
    assert jnp.allclose(yb, refb, atol=1e-6), "large 4D mismatch"

    # bf16 sanity (dtype-aware sublane rounding path).
    xbf = x4.astype(jnp.bfloat16)
    ybf = jax.block_until_ready(add_bias(xbf, bias_param, min_pallas_bytes=0))
    refbf = xbf + bias_param.astype(jnp.bfloat16).reshape(1, C, 1, 1)
    assert ybf.dtype == jnp.bfloat16
    assert jnp.allclose(ybf.astype(jnp.float32), refbf.astype(jnp.float32),
                        atol=1e-2), "bf16 mismatch"

    # Default dispatch on the tiny shapes falls back to the fused XLA add (still correct).
    y4_small = jax.block_until_ready(add_bias(x4, bias_param))
    assert jnp.allclose(y4_small, ref4, atol=1e-6), "fallback mismatch"

    print("KERNEL_OK")
</pallas_src>

<mosaic_0001>
module attributes {stable_mosaic.version = 11 : i64} {
  func.func @_row_bias_kernel(%arg0: i32, %arg1: i32, %arg2: memref<2x1024xf32, #tpu.memory_space<vmem>>, %arg3: memref<1x1024xf32, #tpu.memory_space<vmem>>, %arg4: memref<2x1024xf32, #tpu.memory_space<vmem>>) attributes {dimension_semantics = [#tpu.dimension_semantics<parallel>, #tpu.dimension_semantics<parallel>], iteration_bounds = array<i64: 1, 1>, scalar_prefetch = 0 : i64, scratch_operands = 0 : i64, tpu.core_type = #tpu.core_type<tc>, window_params = [{transform_indices = @transform_0, window_bounds = array<i64: 2, 1024>}, {transform_indices = @transform_1, window_bounds = array<i64: 1, 1024>}, {transform_indices = @transform_2, window_bounds = array<i64: 2, 1024>}]} {
    %c0 = arith.constant 0 : index
    %c0_0 = arith.constant 0 : index
    %0 = vector.load %arg2[%c0, %c0_0] : memref<2x1024xf32, #tpu.memory_space<vmem>>, vector<2x1024xf32>
    %c0_1 = arith.constant 0 : index
    %c0_2 = arith.constant 0 : index
    %1 = vector.load %arg3[%c0_1, %c0_2] : memref<1x1024xf32, #tpu.memory_space<vmem>>, vector<1x1024xf32>
    %2 = vector.broadcast %1 : vector<1x1024xf32> to vector<2x1024xf32>
    %3 = arith.addf %0, %2 : vector<2x1024xf32>
    %c0_3 = arith.constant 0 : index
    %c0_4 = arith.constant 0 : index
    %4 = vector.load %arg4[%c0_3, %c0_4] : memref<2x1024xf32, #tpu.memory_space<vmem>>, vector<2x1024xf32>
    tpu.vector_store %arg4[%c0_3, %c0_4], %3 {strides = array<i32>} : memref<2x1024xf32, #tpu.memory_space<vmem>>, vector<2x1024xf32>,
    return
  }
  func.func @transform_0(%arg0: i32, %arg1: i32) -> (i32, i32) {
    %c0_i32 = arith.constant 0 : i32
    return %arg0, %arg1 : i32, i32
  }
  func.func @transform_1(%arg0: i32, %arg1: i32) -> (i32, i32) {
    %c0_i32 = arith.constant 0 : i32
    %c0_i32_0 = arith.constant 0 : i32
    return %c0_i32, %arg1 : i32, i32
  }
  func.func @transform_2(%arg0: i32, %arg1: i32) -> (i32, i32) {
    %c0_i32 = arith.constant 0 : i32
    return %arg0, %arg1 : i32, i32
  }
}

</mosaic_0001>

<llo_original>
// kernel: tpu_custom_call.1
$region0: #{tpu_custom_call.1}
  #allocation0 [shape = 'u32[]', space=smem, size = 0x4, offset = 0x4, fixed_abs, tag = 'smem constant byte address 0x4 - core index']
  #allocation1 [shape = 'u32[144,128]{1,0:T(1,128)}', space=vmem, size = 0x12000, scoped, tag = 'internal scratch']
  %s0 = inlined_call_operand.hbm [shape: f32[2,1024], index: 0, kind: input, shape index: {}]
  %s1 = inlined_call_operand.hbm [shape: f32[1,1024], index: 1, kind: input, shape index: {}]
  %s2 = inlined_call_operand.hbm [shape: f32[2,1024], index: 2, kind: output, shape index: {}]
  %s3 = sld [smem:[#allocation0]]
  $region26: #{tpu_custom_call.1} parent=0
    _
  %s5 = ssub.s32 1, %s3
  %s6 = scalar_select 0, %s5, %s3
  $region1: #{tpu_custom_call.1} parent=0
    #allocation2 [shape = 'u8[8192]{0}', space=vmem, size = 0x2000, scoped, tag = 'input window, operand 0, single buffered']
    #allocation3 [shape = 's32[1]{0}', space=sflag, size = 0x4, scoped, tag = 'scoped memory for tpu_custom_call.1']
    #allocation4 [shape = 's32[1]{0}', space=sflag, size = 0x4, scoped, tag = 'scoped memory for tpu_custom_call.1']
    #allocation5 [shape = 'u8[4096]{0}', space=vmem, size = 0x1000, scoped, tag = 'input window, operand 1, single buffered']
    #allocation6 [shape = 's32[1]{0}', space=sflag, size = 0x4, scoped, tag = 'scoped memory for tpu_custom_call.1']
    #allocation7 [shape = 'u8[8192]{0}', space=vmem, size = 0x2000, scoped, tag = 'output window, operand 0, single buffered']
    %7 = vsyncpa [#allocation3], 0
    %8 = vsyncpa [#allocation6], 0
    %9 = vsyncpa [#allocation4], 0
    // Predicated region
    $region2: #{tpu_custom_call.1} parent=1 // pred_check
      _
    $region3: #{tpu_custom_call.1} parent=1 // pred_check_branch
      %11 = sbr.rel (0) target = $region5
    $region4: #{tpu_custom_call.1} parent=1 // pred_region
      %s13 = ssub.s32 256, 256
      %14 = vsyncadd [#allocation3], %s13
      %s16 = sshll.u32 [#allocation2], 4
      %s17 = int_to_ptr.vmem [resolvable:$true] %s16
      %19 = dma.hbm_to_vmem [thread:$0]  %s0, 256, %s17, [#allocation3]
    $region5: #{tpu_custom_call.1} parent=1 // pred_fallthru
      _
    // Predicated region
    $region6: #{tpu_custom_call.1} parent=1 // pred_check
      _
    $region7: #{tpu_custom_call.1} parent=1 // pred_check_branch
      %21 = sbr.rel (0) target = $region9
    $region8: #{tpu_custom_call.1} parent=1 // pred_region
      %s23 = ssub.s32 128, 128
      %24 = vsyncadd [#allocation6], %s23
      %s26 = sshll.u32 [#allocation5], 4
      %s27 = int_to_ptr.vmem [resolvable:$true] %s26
      %29 = dma.hbm_to_vmem [thread:$0]  %s1, 128, %s27, [#allocation6]
    $region9: #{tpu_custom_call.1} parent=1 // pred_fallthru
      _
    // Predicated region
    $region10: #{tpu_custom_call.1} parent=1 // pred_check
      _
    $region11: #{tpu_custom_call.1} parent=1 // pred_check_branch
      %31 = sbr.rel (0) target = $region13
    $region12: #{tpu_custom_call.1} parent=1 // pred_region
      %32 = dma.done [#allocation3], 256
    $region13: #{tpu_custom_call.1} parent=1 // pred_fallthru
      _
    // Predicated region
    $region14: #{tpu_custom_call.1} parent=1 // pred_check
      _
    $region15: #{tpu_custom_call.1} parent=1 // pred_check_branch
      %34 = sbr.rel (0) target = $region17
    $region16: #{tpu_custom_call.1} parent=1 // pred_region
      %35 = dma.done [#allocation6], 128
    $region17: #{tpu_custom_call.1} parent=1 // pred_fallthru
      _
    %v36 = vld [vmem:[#allocation2] sm:$0xff]
    %v37 = vld [vmem:[#allocation2 + $0x8] sm:$0xff]
    %v38 = vld [vmem:[#allocation5] sm:$0xff]
    %v40 = vlaneseq
    %v41 = vshrl.u32 %v40, 7
    %v42 = vsub.s32 0, %v41
    %v43 = vrot.slane %v38, %v42
    %v44 = vlaneseq
    %v45 = vshrl.u32 %v44, 7
    %v46 = vsub.s32 1, %v45
    %v47 = vrot.slane %v38, %v46
    %v48 = vlaneseq
    %v49 = vshrl.u32 %v48, 7
    %v50 = vsub.s32 2, %v49
    %v51 = vrot.slane %v38, %v50
    %v52 = vlaneseq
    %v53 = vshrl.u32 %v52, 7
    %v54 = vsub.s32 3, %v53
    %v55 = vrot.slane %v38, %v54
    %v56 = vlaneseq
    %v57 = vshrl.u32 %v56, 7
    %v58 = vsub.s32 4, %v57
    %v59 = vrot.slane %v38, %v58
    %v60 = vlaneseq
    %v61 = vshrl.u32 %v60, 7
    %v62 = vsub.s32 5, %v61
    %v63 = vrot.slane %v38, %v62
    %v64 = vlaneseq
    %v65 = vshrl.u32 %v64, 7
    %v66 = vsub.s32 6, %v65
    %v67 = vrot.slane %v38, %v66
    %v68 = vlaneseq
    %v69 = vshrl.u32 %v68, 7
    %v70 = vsub.s32 7, %v69
    %v71 = vrot.slane %v38, %v70
    %v72 = vcombine.low %v43, %v47
    %v73 = vcombine.low %v51, %v55
    %v75 = vunpack.c.l.s4 1983009808
    %v76 = vunpack.c.0.s8 %v75
    %v77 = vlaneseq
    %v78 = vshrl.u32 %v77, 7
    %v79 = vsub.s32 %v76, %v78
    %v80 = vrot.slane %v72, %v79
    %v82 = vunpack.c.l.s4 1983009808
    %v83 = vunpack.c.0.s8 %v82
    %v84 = vlaneseq
    %v85 = vshrl.u32 %v84, 7
    %v86 = vsub.s32 %v83, %v85
    %v87 = vrot.slane %v73, %v86
    %v88 = vcombine.low %v80, %v87
    %v89 = vcombine.low %v59, %v63
    %v90 = vcombine.low %v67, %v71
    %v92 = vunpack.c.l.s4 1983009808
    %v93 = vunpack.c.0.s8 %v92
    %v94 = vlaneseq
    %v95 = vshrl.u32 %v94, 7
    %v96 = vsub.s32 %v93, %v95
    %v97 = vrot.slane %v89, %v96
    %v99 = vunpack.c.l.s4 1983009808
    %v100 = vunpack.c.0.s8 %v99
    %v101 = vlaneseq
    %v102 = vshrl.u32 %v101, 7
    %v103 = vsub.s32 %v100, %v102
    %v104 = vrot.slane %v90, %v103
    %v105 = vcombine.low %v97, %v104
    %v108 = vadd.f32 %v36, %v88
    %v109 = vadd.f32 %v37, %v105
    %110 = vst [vmem:[#allocation7] sm:$0xff] %v108
    %111 = vst [vmem:[#allocation7 + $0x8] sm:$0xff] %v109
    // Predicated region
    $region18: #{tpu_custom_call.1} parent=1 // pred_check
      _
    $region19: #{tpu_custom_call.1} parent=1 // pred_check_branch
      %113 = sbr.rel (0) target = $region21
    $region20: #{tpu_custom_call.1} parent=1 // pred_region
      %s115 = ssub.s32 256, 256
      %116 = vsyncadd [#allocation4], %s115
      %s118 = sshll.u32 [#allocation7], 4
      %s119 = int_to_ptr.vmem [resolvable:$true] %s118
      %121 = dma.vmem_to_hbm [thread:$0]  %s119, 256, %s2, [#allocation4]
    $region21: #{tpu_custom_call.1} parent=1 // pred_fallthru
      _
    // Predicated region
    $region22: #{tpu_custom_call.1} parent=1 // pred_check
      _
    $region23: #{tpu_custom_call.1} parent=1 // pred_check_branch
      %123 = sbr.rel (0) target = $region25
    $region24: #{tpu_custom_call.1} parent=1 // pred_region
      %124 = dma.done [#allocation4], 256
    $region25: #{tpu_custom_call.1} parent=1 // pred_fallthru
      _
    %125 = vsyncpa [#allocation3], 1
    %126 = vsyncpa [#allocation6], 1
    %127 = vsyncpa [#allocation4], 1

</llo_original>
